<compile_context>
chip_gen: v7x
topology: tpu7x:2x2x1
jax: 0.10.0
libtpu: 0.0.40
codegen_flags: <defaults>
</compile_context>

<pallas_src>
import functools

import jax
import jax.numpy as jnp
from jax.experimental import pallas as pl
from jax.experimental.pallas import tpu as pltpu


def _round_up(x, m):
    return (x + m - 1) // m * m


def _highway_resident_kernel(x_ref, w_ref, b_ref, o_ref, *, num_layers, d_pad):
    """All-layer weights resident in VMEM; loop over layers on the tile."""
    x = x_ref[...]                                          # (TM, D), native dtype
    for l in range(num_layers):                             # static unroll (small)
        hg = jnp.dot(x, w_ref[l], preferred_element_type=jnp.float32)
        hg = hg + b_ref[l].astype(jnp.float32)              # (TM, 2D) + (1, 2D)
        proj = jnp.maximum(hg[:, :d_pad], 0.0)              # ReLU    (VPU)
        gate = jax.nn.sigmoid(hg[:, d_pad:])                # sigmoid (EUP)
        xf = x.astype(jnp.float32)
        x = (proj + gate * (xf - proj)).astype(o_ref.dtype)  # gate*x+(1-gate)*p
    o_ref[...] = x


def _highway_layer_grid_kernel(x_ref, w_ref, b_ref, o_ref, *, d_pad):
    """Fallback: layer axis on the grid, activation tile resident across it."""
    layer = pl.program_id(1)

    # Load the input tile into the resident output block only on layer 0.
    @pl.when(layer == 0)
    def _():
        o_ref[...] = x_ref[...]

    x = o_ref[...]                                          # (TM, D), native dtype
    hg = jnp.dot(x, w_ref[...], preferred_element_type=jnp.float32)
    hg = hg + b_ref[...].astype(jnp.float32)
    proj = jnp.maximum(hg[:, :d_pad], 0.0)
    gate = jax.nn.sigmoid(hg[:, d_pad:])
    xf = x.astype(jnp.float32)
    o_ref[...] = (proj + gate * (xf - proj)).astype(o_ref.dtype)
    # Output block index is constant over the layer axis, so only the value
    # after the last layer is written back to HBM.


def prepare_highway_params(weights, biases, *, weight_dtype=None):
    """Pre-transpose / split / concat / zero-pad torch-layout params ONCE.

    weights[l]: (2D, D) torch layout; biases[l]: (2D,).
    Returns (W_cat stacked (L, D_pad, 2*D_pad), b_cat stacked (L, 1, 2*D_pad),
    d, d_pad).
    """
    d = weights[0].shape[1]
    d_pad = _round_up(d, 128)
    w_l, b_l = [], []
    for w, b in zip(weights, biases):
        wt = jnp.transpose(w)                               # (D, 2D)
        wh, wg = wt[:, :d], wt[:, d:]                       # (D, D) each
        bh, bg = b[:d], b[d:]
        if weight_dtype is not None:                        # e.g. bf16 on v6e/v7x
            wh, wg = wh.astype(weight_dtype), wg.astype(weight_dtype)
        pad2 = ((0, d_pad - d), (0, d_pad - d))
        w_cat = jnp.concatenate([jnp.pad(wh, pad2), jnp.pad(wg, pad2)], axis=1)
        b_cat = jnp.concatenate([jnp.pad(bh, (0, d_pad - d)),
                                 jnp.pad(bg, (0, d_pad - d))]).reshape(1, 2 * d_pad)
        w_l.append(w_cat)
        b_l.append(b_cat)
    return jnp.stack(w_l), jnp.stack(b_l), d, d_pad


def highway_forward(x, params, *, tile_m=256, force_layer_grid=False,
                    interpret=False):
    """x: (..., D).  params from prepare_highway_params."""
    w_s, b_s, d, d_pad = params
    num_layers = w_s.shape[0]
    two_d = 2 * d_pad

    orig_shape = x.shape
    assert orig_shape[-1] == d
    x2 = x.reshape(-1, d)
    n = x2.shape[0]

    # Large MXU-aligned row tile, bounded so the f32 (TM, 2*D_pad) matmul
    # intermediate stays comfortably inside VMEM, and never bigger than N.
    max_tm = max(8, ((8 * 1024 * 1024) // (8 * d_pad)) // 8 * 8)
    tile_m = min(tile_m, max_tm)
    tile_m = max(8, _round_up(min(tile_m, _round_up(n, 8)), 8))
    n_pad = _round_up(n, tile_m)

    # Zero-pad rows / features only when needed (zero weight-padding keeps the
    # real columns exact through every layer).
    if n_pad != n or d_pad != d:
        x2 = jnp.pad(x2, ((0, n_pad - n), (0, d_pad - d)))

    a_bytes = x2.dtype.itemsize
    w_bytes = w_s.dtype.itemsize
    b_bytes = b_s.dtype.itemsize
    act_vmem = 2 * 2 * tile_m * d_pad * a_bytes             # x + out tiles, 2-buffered
    w_all = w_s.size * w_bytes + b_s.size * b_bytes         # all layers' params
    w_per_layer = w_all // num_layers

    # Prefer the weights-resident strategy whenever all layers fit in VMEM
    # (accounting for default double-buffering); safe on v7x's 64 MiB VMEM.
    use_resident = (not force_layer_grid) and \
        (act_vmem + 2 * w_all + 2 * tile_m * two_d * 4) <= 40 * 1024 * 1024

    n_tiles = n_pad // tile_m
    flops = 2 * n_pad * d_pad * two_d * num_layers
    transcendentals = n_pad * d_pad * num_layers

    if use_resident:
        grid = (n_tiles,)
        kernel = functools.partial(_highway_resident_kernel,
                                   num_layers=num_layers, d_pad=d_pad)
        in_specs = [
            pl.BlockSpec((tile_m, d_pad), lambda i: (i, 0)),                # x tile
            pl.BlockSpec((num_layers, d_pad, two_d), lambda i: (0, 0, 0)),  # all W
            pl.BlockSpec((num_layers, 1, two_d), lambda i: (0, 0, 0)),      # all b
        ]
        out_specs = pl.BlockSpec((tile_m, d_pad), lambda i: (i, 0))
        dim_sem = ("parallel",)
        bytes_accessed = 2 * n_pad * d_pad * a_bytes + w_all
        vmem_est = act_vmem + 2 * w_all + 2 * tile_m * two_d * 4
    else:
        grid = (n_tiles, num_layers)
        kernel = functools.partial(_highway_layer_grid_kernel, d_pad=d_pad)
        in_specs = [
            pl.BlockSpec((tile_m, d_pad), lambda i, l: (i, 0)),             # x tile
            pl.BlockSpec((None, d_pad, two_d), lambda i, l: (l, 0, 0)),     # W[l]
            pl.BlockSpec((None, 1, two_d), lambda i, l: (l, 0, 0)),         # b[l]
        ]
        out_specs = pl.BlockSpec((tile_m, d_pad), lambda i, l: (i, 0))
        dim_sem = ("parallel", "arbitrary")
        bytes_accessed = 2 * n_pad * d_pad * a_bytes + n_tiles * w_all
        vmem_est = act_vmem + 2 * w_per_layer + 2 * tile_m * two_d * 4

    cost = pl.CostEstimate(flops=flops, transcendentals=transcendentals,
                           bytes_accessed=int(bytes_accessed))
    vmem_limit = int(min(64 * 1024 * 1024,
                         max(int(1.25 * vmem_est), 8 * 1024 * 1024)))

    out = pl.pallas_call(
        kernel,
        out_shape=jax.ShapeDtypeStruct((n_pad, d_pad), x.dtype),
        grid_spec=pltpu.PrefetchScalarGridSpec(
            num_scalar_prefetch=0,
            grid=grid,
            in_specs=in_specs,
            out_specs=out_specs,
        ),
        compiler_params=pltpu.CompilerParams(
            dimension_semantics=dim_sem,
            vmem_limit_bytes=vmem_limit),
        cost_estimate=cost,
        interpret=interpret,
    )(x2, w_s, b_s)

    if n_pad != n or d_pad != d:
        out = out[:n, :d]
    return out.reshape(orig_shape)


def init_highway_params(key, input_dim, num_layers):
    """Deterministic init matching Highway.reset_parameters() (torch layout)."""
    weights, biases = [], []
    fan_out, fan_in = 2 * input_dim, input_dim
    std = (2.0 / (fan_in + fan_out)) ** 0.5                 # xavier_normal_
    for _ in range(num_layers):
        key, sub = jax.random.split(key)
        w = std * jax.random.normal(sub, (2 * input_dim, input_dim),
                                    dtype=jnp.float32)
        b = jnp.concatenate([jnp.zeros((input_dim,), jnp.float32),   # carry bias 0
                             jnp.ones((input_dim,), jnp.float32)])   # gate bias 1
        weights.append(w)
        biases.append(b)
    return weights, biases


def highway_reference(x, weights, biases):
    """Pure-JAX reference mirroring the PyTorch forward."""
    d = x.shape[-1]
    for w, b in zip(weights, biases):
        proj = x @ w.T + b
        proj_x, gate = proj[..., :d], proj[..., d:]
        proj_x = jnp.maximum(proj_x, 0.0)
        gate = jax.nn.sigmoid(gate)
        x = gate * x + (1.0 - gate) * proj_x
    return x


if __name__ == "__main__":
    batch, seq, input_dim, num_layers = 2, 8, 32, 2

    key = jax.random.PRNGKey(0)
    key, kx = jax.random.split(key)
    x = jax.random.normal(kx, (batch, seq, input_dim), dtype=jnp.float32)

    weights, biases = init_highway_params(key, input_dim, num_layers)

    # Pre-transpose/split/concat/pad once at parameter-load time (f32 to match
    # the torch-f32 reference; pass weight_dtype=jnp.bfloat16 on v6e/v7x for
    # full MXU throughput).
    params = prepare_highway_params(weights, biases)

    ref = highway_reference(x, weights, biases)

    # Default path: all-layer weights resident in VMEM, single fused call.
    out = jax.block_until_ready(highway_forward(x, params, tile_m=256))
    assert out.shape == x.shape
    assert jnp.allclose(out, ref, atol=2e-5, rtol=2e-5), "resident path mismatch"

    # Fallback path: per-layer weight streaming (used when weights overflow VMEM).
    out2 = jax.block_until_ready(
        highway_forward(x, params, tile_m=256, force_layer_grid=True))
    assert jnp.allclose(out2, ref, atol=2e-5, rtol=2e-5), "layer-grid path mismatch"

    print("KERNEL_OK")
</pallas_src>

<mosaic_0001>
module attributes {stable_mosaic.version = 11 : i64} {
  func.func @_highway_resident_kernel(%arg0: i32, %arg1: memref<16x128xf32, #tpu.memory_space<vmem>>, %arg2: memref<2x128x256xf32, #tpu.memory_space<vmem>>, %arg3: memref<2x1x256xf32, #tpu.memory_space<vmem>>, %arg4: memref<16x128xf32, #tpu.memory_space<vmem>>) attributes {dimension_semantics = [#tpu.dimension_semantics<parallel>], iteration_bounds = array<i64: 1>, scalar_prefetch = 0 : i64, scratch_operands = 0 : i64, tpu.core_type = #tpu.core_type<tc>, window_params = [{transform_indices = @transform_0, window_bounds = array<i64: 16, 128>}, {pipeline_mode = #tpu.pipeline_mode<synchronous>, transform_indices = @transform_1, window_bounds = array<i64: 2, 128, 256>}, {pipeline_mode = #tpu.pipeline_mode<synchronous>, transform_indices = @transform_2, window_bounds = array<i64: 2, 1, 256>}, {transform_indices = @transform_3, window_bounds = array<i64: 16, 128>}]} {
    %c0 = arith.constant 0 : index
    %c0_0 = arith.constant 0 : index
    %0 = vector.load %arg1[%c0, %c0_0] : memref<16x128xf32, #tpu.memory_space<vmem>>, vector<16x128xf32>
    %c0_1 = arith.constant 0 : index
    %c0_2 = arith.constant 0 : index
    %c0_3 = arith.constant 0 : index
    %1 = vector.load %arg2[%c0_1, %c0_2, %c0_3] : memref<2x128x256xf32, #tpu.memory_space<vmem>>, vector<1x128x256xf32>
    %2 = vector.shape_cast %1 : vector<1x128x256xf32> to vector<128x256xf32>
    %cst = arith.constant dense<0.000000e+00> : vector<16x256xf32>
    %3 = tpu.matmul %0, %2, %cst {dimension_numbers = #tpu.dot_dimension_numbers<[1], [0], [0], [1], [0, 0, 1, 1], [], []>} : vector<16x128xf32>, vector<128x256xf32>, vector<16x256xf32> -> vector<16x256xf32>
    %c0_4 = arith.constant 0 : index
    %c0_5 = arith.constant 0 : index
    %c0_6 = arith.constant 0 : index
    %4 = vector.load %arg3[%c0_4, %c0_5, %c0_6] : memref<2x1x256xf32, #tpu.memory_space<vmem>>, vector<1x1x256xf32>
    %5 = vector.shape_cast %4 : vector<1x1x256xf32> to vector<1x256xf32>
    %6 = vector.broadcast %5 : vector<1x256xf32> to vector<16x256xf32>
    %7 = arith.addf %3, %6 : vector<16x256xf32>
    %8 = vector.extract_strided_slice %7 {offsets = [0, 0], sizes = [16, 128], strides = [1, 1]} : vector<16x256xf32> to vector<16x128xf32>
    %cst_7 = arith.constant 0.000000e+00 : f32
    %9 = vector.broadcast %cst_7 : f32 to vector<16x128xf32>
    %10 = arith.maximumf %8, %9 : vector<16x128xf32>
    %11 = vector.extract_strided_slice %7 {offsets = [0, 128], sizes = [16, 128], strides = [1, 1]} : vector<16x256xf32> to vector<16x128xf32>
    %12 = arith.negf %11 : vector<16x128xf32>
    %13 = math.exp %12 : vector<16x128xf32>
    %cst_8 = arith.constant 1.000000e+00 : f32
    %14 = vector.broadcast %cst_8 : f32 to vector<16x128xf32>
    %15 = arith.addf %14, %13 : vector<16x128xf32>
    %16 = arith.divf %14, %15 : vector<16x128xf32>
    %17 = arith.subf %0, %10 : vector<16x128xf32>
    %18 = arith.mulf %16, %17 : vector<16x128xf32>
    %19 = arith.addf %10, %18 : vector<16x128xf32>
    %c1 = arith.constant 1 : index
    %c0_9 = arith.constant 0 : index
    %c0_10 = arith.constant 0 : index
    %20 = vector.load %arg2[%c1, %c0_9, %c0_10] : memref<2x128x256xf32, #tpu.memory_space<vmem>>, vector<1x128x256xf32>
    %21 = vector.shape_cast %20 : vector<1x128x256xf32> to vector<128x256xf32>
    %cst_11 = arith.constant dense<0.000000e+00> : vector<16x256xf32>
    %22 = tpu.matmul %19, %21, %cst_11 {dimension_numbers = #tpu.dot_dimension_numbers<[1], [0], [0], [1], [0, 0, 1, 1], [], []>} : vector<16x128xf32>, vector<128x256xf32>, vector<16x256xf32> -> vector<16x256xf32>
    %c1_12 = arith.constant 1 : index
    %c0_13 = arith.constant 0 : index
    %c0_14 = arith.constant 0 : index
    %23 = vector.load %arg3[%c1_12, %c0_13, %c0_14] : memref<2x1x256xf32, #tpu.memory_space<vmem>>, vector<1x1x256xf32>
    %24 = vector.shape_cast %23 : vector<1x1x256xf32> to vector<1x256xf32>
    %25 = vector.broadcast %24 : vector<1x256xf32> to vector<16x256xf32>
    %26 = arith.addf %22, %25 : vector<16x256xf32>
    %27 = vector.extract_strided_slice %26 {offsets = [0, 0], sizes = [16, 128], strides = [1, 1]} : vector<16x256xf32> to vector<16x128xf32>
    %cst_15 = arith.constant 0.000000e+00 : f32
    %28 = vector.broadcast %cst_15 : f32 to vector<16x128xf32>
    %29 = arith.maximumf %27, %28 : vector<16x128xf32>
    %30 = vector.extract_strided_slice %26 {offsets = [0, 128], sizes = [16, 128], strides = [1, 1]} : vector<16x256xf32> to vector<16x128xf32>
    %31 = arith.negf %30 : vector<16x128xf32>
    %32 = math.exp %31 : vector<16x128xf32>
    %cst_16 = arith.constant 1.000000e+00 : f32
    %33 = vector.broadcast %cst_16 : f32 to vector<16x128xf32>
    %34 = arith.addf %33, %32 : vector<16x128xf32>
    %35 = arith.divf %33, %34 : vector<16x128xf32>
    %36 = arith.subf %19, %29 : vector<16x128xf32>
    %37 = arith.mulf %35, %36 : vector<16x128xf32>
    %38 = arith.addf %29, %37 : vector<16x128xf32>
    %c0_17 = arith.constant 0 : index
    %c0_18 = arith.constant 0 : index
    %39 = vector.load %arg4[%c0_17, %c0_18] : memref<16x128xf32, #tpu.memory_space<vmem>>, vector<16x128xf32>
    tpu.vector_store %arg4[%c0_17, %c0_18], %38 {strides = array<i32>} : memref<16x128xf32, #tpu.memory_space<vmem>>, vector<16x128xf32>,
    return
  }
  func.func @transform_0(%arg0: i32) -> (i32, i32) {
    %c0_i32 = arith.constant 0 : i32
    %c0_i32_0 = arith.constant 0 : i32
    return %arg0, %c0_i32 : i32, i32
  }
  func.func @transform_1(%arg0: i32) -> (i32, i32, i32) {
    %c0_i32 = arith.constant 0 : i32
    %c0_i32_0 = arith.constant 0 : i32
    %c0_i32_1 = arith.constant 0 : i32
    %c0_i32_2 = arith.constant 0 : i32
    return %c0_i32, %c0_i32_0, %c0_i32_1 : i32, i32, i32
  }
  func.func @transform_2(%arg0: i32) -> (i32, i32, i32) {
    %c0_i32 = arith.constant 0 : i32
    %c0_i32_0 = arith.constant 0 : i32
    %c0_i32_1 = arith.constant 0 : i32
    %c0_i32_2 = arith.constant 0 : i32
    return %c0_i32, %c0_i32_0, %c0_i32_1 : i32, i32, i32
  }
  func.func @transform_3(%arg0: i32) -> (i32, i32) {
    %c0_i32 = arith.constant 0 : i32
    %c0_i32_0 = arith.constant 0 : i32
    return %arg0, %c0_i32 : i32, i32
  }
}

</mosaic_0001>

<llo_original>
// kernel: tpu_custom_call.1
$region0: #{tpu_custom_call.1}
  #allocation0 [shape = 'u32[]', space=smem, size = 0x4, offset = 0x4, fixed_abs, tag = 'smem constant byte address 0x4 - core index']
  #allocation1 [shape = 'u32[144,128]{1,0:T(1,128)}', space=vmem, size = 0x12000, scoped, tag = 'internal scratch']
  %s0 = inlined_call_operand.hbm [shape: f32[16,128], index: 0, kind: input, shape index: {}]
  %s1 = inlined_call_operand.hbm [shape: f32[2,128,256], index: 1, kind: input, shape index: {}]
  %s2 = inlined_call_operand.vmem [shape: f32[2,1,256], index: 2, kind: input, shape index: {}]
  %s3 = inlined_call_operand.hbm [shape: f32[16,128], index: 3, kind: output, shape index: {}]
  %s4 = sld [smem:[#allocation0]]
  $region30: #{tpu_custom_call.1} parent=0
    _
  %s6 = ssub.s32 1, %s4
  %s7 = scalar_select 0, %s6, %s4
  $region1: #{tpu_custom_call.1} parent=0
    #allocation2 [shape = 'u8[8192]{0}', space=vmem, size = 0x2000, scoped, tag = 'input window, operand 0, single buffered']
    #allocation3 [shape = 's32[1]{0}', space=sflag, size = 0x4, scoped, tag = 'scoped memory for tpu_custom_call.1']
    #allocation4 [shape = 's32[1]{0}', space=sflag, size = 0x4, scoped, tag = 'scoped memory for tpu_custom_call.1']
    #allocation5 [shape = 'u8[262144]{0}', space=vmem, size = 0x40000, scoped, tag = 'input window, operand 1, single buffered']
    #allocation6 [shape = 's32[1]{0}', space=sflag, size = 0x4, scoped, tag = 'scoped memory for tpu_custom_call.1']
    #allocation7 [shape = 'u8[8192]{0}', space=vmem, size = 0x2000, scoped, tag = 'output window, operand 0, single buffered']
    %8 = vsyncpa [#allocation3], 0
    %9 = vsyncpa [#allocation6], 0
    %10 = vsyncpa [#allocation4], 0
    // Predicated region
    $region2: #{tpu_custom_call.1} parent=1 // pred_check
      _
    $region3: #{tpu_custom_call.1} parent=1 // pred_check_branch
      %12 = sbr.rel (0) target = $region5
    $region4: #{tpu_custom_call.1} parent=1 // pred_region
      %s14 = ssub.s32 256, 256
      %15 = vsyncadd [#allocation3], %s14
      %s16 = sshll.u32 [#allocation2], 4
      %s17 = int_to_ptr.vmem [resolvable:$true] %s16
      %22 = dma.hbm_to_vmem [thread:$0]  %s0, 256, %s17, [#allocation3], 128, 128, 8
    $region5: #{tpu_custom_call.1} parent=1 // pred_fallthru
      _
    // Predicated region
    $region6: #{tpu_custom_call.1} parent=1 // pred_check
      _
    $region7: #{tpu_custom_call.1} parent=1 // pred_check_branch
      %24 = sbr.rel (0) target = $region9
    $region8: #{tpu_custom_call.1} parent=1 // pred_region
      %s26 = ssub.s32 8192, 8192
      %27 = vsyncadd [#allocation6], %s26
      %s28 = sshll.u32 [#allocation5], 4
      %s29 = int_to_ptr.vmem [resolvable:$true] %s28
      %34 = dma.hbm_to_vmem [thread:$0]  %s1, 8192, %s29, [#allocation6], 256, 256, 16
    $region9: #{tpu_custom_call.1} parent=1 // pred_fallthru
      _
    // Predicated region
    $region10: #{tpu_custom_call.1} parent=1 // pred_check
      _
    $region11: #{tpu_custom_call.1} parent=1 // pred_check_branch
      %36 = sbr.rel (0) target = $region13
    $region12: #{tpu_custom_call.1} parent=1 // pred_region
      _
    $region13: #{tpu_custom_call.1} parent=1 // pred_fallthru
      _
    // Predicated region
    $region14: #{tpu_custom_call.1} parent=1 // pred_check
      _
    $region15: #{tpu_custom_call.1} parent=1 // pred_check_branch
      %38 = sbr.rel (0) target = $region17
    $region16: #{tpu_custom_call.1} parent=1 // pred_region
      %39 = dma.done [#allocation3], 256
    $region17: #{tpu_custom_call.1} parent=1 // pred_fallthru
      _
    // Predicated region
    $region18: #{tpu_custom_call.1} parent=1 // pred_check
      _
    $region19: #{tpu_custom_call.1} parent=1 // pred_check_branch
      %41 = sbr.rel (0) target = $region21
    $region20: #{tpu_custom_call.1} parent=1 // pred_region
      %42 = dma.done [#allocation6], 8192
    $region21: #{tpu_custom_call.1} parent=1 // pred_fallthru
      _
    %v43 = vld [vmem:[#allocation2] sm:$0xff]
    %v44 = vld [vmem:[#allocation2 + $0x8] sm:$0xff]
    %v45 = vld [vmem:[#allocation5] sm:$0xff]
    %v46 = vld [vmem:[#allocation5 + $0x8] sm:$0xff]
    %v47 = vld [vmem:[#allocation5 + $0x10] sm:$0xff]
    %v48 = vld [vmem:[#allocation5 + $0x18] sm:$0xff]
    %v49 = vld [vmem:[#allocation5 + $0x20] sm:$0xff]
    %v50 = vld [vmem:[#allocation5 + $0x28] sm:$0xff]
    %v51 = vld [vmem:[#allocation5 + $0x30] sm:$0xff]
    %v52 = vld [vmem:[#allocation5 + $0x38] sm:$0xff]
    %v53 = vld [vmem:[#allocation5 + $0x40] sm:$0xff]
    %v54 = vld [vmem:[#allocation5 + $0x48] sm:$0xff]
    %v55 = vld [vmem:[#allocation5 + $0x50] sm:$0xff]
    %v56 = vld [vmem:[#allocation5 + $0x58] sm:$0xff]
    %v57 = vld [vmem:[#allocation5 + $0x60] sm:$0xff]
    %v58 = vld [vmem:[#allocation5 + $0x68] sm:$0xff]
    %v59 = vld [vmem:[#allocation5 + $0x70] sm:$0xff]
    %v60 = vld [vmem:[#allocation5 + $0x78] sm:$0xff]
    %v61 = vld [vmem:[#allocation5 + $0x80] sm:$0xff]
    %v62 = vld [vmem:[#allocation5 + $0x88] sm:$0xff]
    %v63 = vld [vmem:[#allocation5 + $0x90] sm:$0xff]
    %v64 = vld [vmem:[#allocation5 + $0x98] sm:$0xff]
    %v65 = vld [vmem:[#allocation5 + $0xa0] sm:$0xff]
    %v66 = vld [vmem:[#allocation5 + $0xa8] sm:$0xff]
    %v67 = vld [vmem:[#allocation5 + $0xb0] sm:$0xff]
    %v68 = vld [vmem:[#allocation5 + $0xb8] sm:$0xff]
    %v69 = vld [vmem:[#allocation5 + $0xc0] sm:$0xff]
    %v70 = vld [vmem:[#allocation5 + $0xc8] sm:$0xff]
    %v71 = vld [vmem:[#allocation5 + $0xd0] sm:$0xff]
    %v72 = vld [vmem:[#allocation5 + $0xd8] sm:$0xff]
    %v73 = vld [vmem:[#allocation5 + $0xe0] sm:$0xff]
    %v74 = vld [vmem:[#allocation5 + $0xe8] sm:$0xff]
    %v75 = vld [vmem:[#allocation5 + $0xf0] sm:$0xff]
    %v76 = vld [vmem:[#allocation5 + $0xf8] sm:$0xff]
    %v77 = vld [vmem:[%s2] sm:$0x3]
    %v79 = vlaneseq
    %v80 = vshrl.u32 %v79, 7
    %v81 = vsub.s32 0, %v80
    %v82 = vrot.slane %v77, %v81
    %v83 = vlaneseq
    %v84 = vshrl.u32 %v83, 7
    %v85 = vsub.s32 1, %v84
    %v86 = vrot.slane %v77, %v85
    %89 = vmatprep.subr.mxu0 %v46
    %90 = vmatpush1.msra.mxu0 %v45
    %91 = vmatprep.subr.mxu0 %v48
    %92 = vmatpush1.msra.mxu0 %v47
    %93 = vmatprep.subr.mxu0 %v50
    %94 = vmatpush1.msra.mxu0 %v49
    %95 = vmatprep.subr.mxu0 %v52
    %96 = vmatpush1.msra.mxu0 %v51
    %97 = vmatprep.subr.mxu0 %v54
    %98 = vmatpush1.msra.mxu0 %v53
    %99 = vmatprep.subr.mxu0 %v56
    %100 = vmatpush1.msra.mxu0 %v55
    %101 = vmatprep.subr.mxu0 %v58
    %102 = vmatpush1.msra.mxu0 %v57
    %103 = vmatprep.subr.mxu0 %v60
    %104 = vmatpush1.msra.mxu0 %v59
    %105 = vmatprep.subr.mxu0 %v62
    %106 = vmatpush1.msra.mxu0 %v61
    %107 = vmatprep.subr.mxu0 %v64
    %108 = vmatpush1.msra.mxu0 %v63
    %109 = vmatprep.subr.mxu0 %v66
    %110 = vmatpush1.msra.mxu0 %v65
    %111 = vmatprep.subr.mxu0 %v68
    %112 = vmatpush1.msra.mxu0 %v67
    %113 = vmatprep.subr.mxu0 %v70
    %114 = vmatpush1.msra.mxu0 %v69
    %115 = vmatprep.subr.mxu0 %v72
    %116 = vmatpush1.msra.mxu0 %v71
    %117 = vmatprep.subr.mxu0 %v74
    %118 = vmatpush1.msra.mxu0 %v73
    %119 = vmatprep.subr.mxu0 %v76
    %120 = vmatpush1.msra.mxu0 %v75
    %121 = vmatprep.subr.mxu0 0.0
    %122 = vmatpush1.msra.mxu0 0.0
    %123 = vmatprep.subr.mxu0 0.0
    %124 = vmatpush1.msra.mxu0 0.0
    %125 = vmatprep.subr.mxu0 0.0
    %126 = vmatpush1.msra.mxu0 0.0
    %127 = vmatprep.subr.mxu0 0.0
    %128 = vmatpush1.msra.mxu0 0.0
    %129 = vmatprep.subr.mxu0 0.0
    %130 = vmatpush1.msra.mxu0 0.0
    %131 = vmatprep.subr.mxu0 0.0
    %132 = vmatpush1.msra.mxu0 0.0
    %133 = vmatprep.subr.mxu0 0.0
    %134 = vmatpush1.msra.mxu0 0.0
    %135 = vmatprep.subr.mxu0 0.0
    %136 = vmatpush1.msra.mxu0 0.0
    %137 = vmatprep.subr.mxu0 0.0
    %138 = vmatpush1.msra.mxu0 0.0
    %139 = vmatprep.subr.mxu0 0.0
    %140 = vmatpush1.msra.mxu0 0.0
    %141 = vmatprep.subr.mxu0 0.0
    %142 = vmatpush1.msra.mxu0 0.0
    %143 = vmatprep.subr.mxu0 0.0
    %144 = vmatpush1.msra.mxu0 0.0
    %145 = vmatprep.subr.mxu0 0.0
    %146 = vmatpush1.msra.mxu0 0.0
    %147 = vmatprep.subr.mxu0 0.0
    %148 = vmatpush1.msra.mxu0 0.0
    %149 = vmatprep.subr.mxu0 0.0
    %150 = vmatpush1.msra.mxu0 0.0
    %151 = vmatprep.subr.mxu0 0.0
    %152 = vmatpush1.msra.mxu0 0.0
    %153 = vmatprep.mubr.f32.mxu0 0.0
    %154 = vmatmul.mubr.f32.gmra.mrb[0].mxu0 %v43
    %v155 = vpop.f32.mrb[0].mxu0
    %v156 = vadd.f32 %v82, %v155
    %v157 = vpop.f32.mrb[0].mxu0
    %v158 = vadd.f32 %v86, %v157
    %159 = vmatprep.mubr.f32.mxu0 0.0
    %160 = vmatmul.mubr.f32.gmra.mrb[0].mxu0 %v44
    %v161 = vpop.f32.mrb[0].mxu0
    %v162 = vadd.f32 %v82, %v161
    %v163 = vpop.f32.mrb[0].mxu0
    %v164 = vadd.f32 %v86, %v163
    %165 = vdwg.mxu0
    %v166 = vmax.f32 %v156, 0.0
    %v167 = vmax.f32 %v162, 0.0
    %v168 = vxor.u32 %v158, 2147483648
    %v169 = vxor.u32 %v164, 2147483648
    %v170 = vmul.f32 %v168, 1.442695
    %v171 = vpow.pop %v170
    %v172 = vmul.f32 %v169, 1.442695
    %v173 = vpow.pop %v172
    %v174 = vadd.f32 %v171, 1.0
    %v175 = vadd.f32 %v173, 1.0
    %v176 = vrcp.pop %v174
    %v177 = vmul.f32 1.0, %v176
    %v178 = vrcp.pop %v175
    %v179 = vmul.f32 1.0, %v178
    %v180 = vsub.f32 %v43, %v166
    %v181 = vsub.f32 %v44, %v167
    %v182 = vmul.f32 %v177, %v180
    %v183 = vmul.f32 %v179, %v181
    %v184 = vadd.f32 %v166, %v182
    %v185 = vadd.f32 %v167, %v183
    %s186 = scalar_lea.vmem [#allocation5], 256
    %v187 = vld [vmem:[%s186] sm:$0xff]
    %v188 = vld [vmem:[%s186 + $0x8] sm:$0xff]
    %v189 = vld [vmem:[%s186 + $0x10] sm:$0xff]
    %v190 = vld [vmem:[%s186 + $0x18] sm:$0xff]
    %v191 = vld [vmem:[%s186 + $0x20] sm:$0xff]
    %v192 = vld [vmem:[%s186 + $0x28] sm:$0xff]
    %v193 = vld [vmem:[%s186 + $0x30] sm:$0xff]
    %v194 = vld [vmem:[%s186 + $0x38] sm:$0xff]
    %v195 = vld [vmem:[%s186 + $0x40] sm:$0xff]
    %v196 = vld [vmem:[%s186 + $0x48] sm:$0xff]
    %v197 = vld [vmem:[%s186 + $0x50] sm:$0xff]
    %v198 = vld [vmem:[%s186 + $0x58] sm:$0xff]
    %v199 = vld [vmem:[%s186 + $0x60] sm:$0xff]
    %v200 = vld [vmem:[%s186 + $0x68] sm:$0xff]
    %v201 = vld [vmem:[%s186 + $0x70] sm:$0xff]
    %v202 = vld [vmem:[%s186 + $0x78] sm:$0xff]
    %v203 = vld [vmem:[%s186 + $0x80] sm:$0xff]
    %v204 = vld [vmem:[%s186 + $0x88] sm:$0xff]
    %v205 = vld [vmem:[%s186 + $0x90] sm:$0xff]
    %v206 = vld [vmem:[%s186 + $0x98] sm:$0xff]
    %v207 = vld [vmem:[%s186 + $0xa0] sm:$0xff]
    %v208 = vld [vmem:[%s186 + $0xa8] sm:$0xff]
    %v209 = vld [vmem:[%s186 + $0xb0] sm:$0xff]
    %v210 = vld [vmem:[%s186 + $0xb8] sm:$0xff]
    %v211 = vld [vmem:[%s186 + $0xc0] sm:$0xff]
    %v212 = vld [vmem:[%s186 + $0xc8] sm:$0xff]
    %v213 = vld [vmem:[%s186 + $0xd0] sm:$0xff]
    %v214 = vld [vmem:[%s186 + $0xd8] sm:$0xff]
    %v215 = vld [vmem:[%s186 + $0xe0] sm:$0xff]
    %v216 = vld [vmem:[%s186 + $0xe8] sm:$0xff]
    %v217 = vld [vmem:[%s186 + $0xf0] sm:$0xff]
    %v218 = vld [vmem:[%s186 + $0xf8] sm:$0xff]
    %s219 = scalar_lea.vmem %s2, 2
    %v220 = vld [vmem:[%s219] sm:$0x3]
    %v222 = vlaneseq
    %v223 = vshrl.u32 %v222, 7
    %v224 = vsub.s32 0, %v223
    %v225 = vrot.slane %v220, %v224
    %v226 = vlaneseq
    %v227 = vshrl.u32 %v226, 7
    %v228 = vsub.s32 1, %v227
    %v229 = vrot.slane %v220, %v228
    %232 = vmatprep.subr.mxu0 %v188
    %233 = vmatpush1.msra.mxu0 %v187
    %234 = vmatprep.subr.mxu0 %v190
    %235 = vmatpush1.msra.mxu0 %v189
    %236 = vmatprep.subr.mxu0 %v192
    %237 = vmatpush1.msra.mxu0 %v191
    %238 = vmatprep.subr.mxu0 %v194
    %239 = vmatpush1.msra.mxu0 %v193
    %240 = vmatprep.subr.mxu0 %v196
    %241 = vmatpush1.msra.mxu0 %v195
    %242 = vmatprep.subr.mxu0 %v198
    %243 = vmatpush1.msra.mxu0 %v197
    %244 = vmatprep.subr.mxu0 %v200
    %245 = vmatpush1.msra.mxu0 %v199
    %246 = vmatprep.subr.mxu0 %v202
    %247 = vmatpush1.msra.mxu0 %v201
    %248 = vmatprep.subr.mxu0 %v204
    %249 = vmatpush1.msra.mxu0 %v203
    %250 = vmatprep.subr.mxu0 %v206
    %251 = vmatpush1.msra.mxu0 %v205
    %252 = vmatprep.subr.mxu0 %v208
    %253 = vmatpush1.msra.mxu0 %v207
    %254 = vmatprep.subr.mxu0 %v210
    %255 = vmatpush1.msra.mxu0 %v209
    %256 = vmatprep.subr.mxu0 %v212
    %257 = vmatpush1.msra.mxu0 %v211
    %258 = vmatprep.subr.mxu0 %v214
    %259 = vmatpush1.msra.mxu0 %v213
    %260 = vmatprep.subr.mxu0 %v216
    %261 = vmatpush1.msra.mxu0 %v215
    %262 = vmatprep.subr.mxu0 %v218
    %263 = vmatpush1.msra.mxu0 %v217
    %264 = vmatprep.subr.mxu0 0.0
    %265 = vmatpush1.msra.mxu0 0.0
    %266 = vmatprep.subr.mxu0 0.0
    %267 = vmatpush1.msra.mxu0 0.0
    %268 = vmatprep.subr.mxu0 0.0
    %269 = vmatpush1.msra.mxu0 0.0
    %270 = vmatprep.subr.mxu0 0.0
    %271 = vmatpush1.msra.mxu0 0.0
    %272 = vmatprep.subr.mxu0 0.0
    %273 = vmatpush1.msra.mxu0 0.0
    %274 = vmatprep.subr.mxu0 0.0
    %275 = vmatpush1.msra.mxu0 0.0
    %276 = vmatprep.subr.mxu0 0.0
    %277 = vmatpush1.msra.mxu0 0.0
    %278 = vmatprep.subr.mxu0 0.0
    %279 = vmatpush1.msra.mxu0 0.0
    %280 = vmatprep.subr.mxu0 0.0
    %281 = vmatpush1.msra.mxu0 0.0
    %282 = vmatprep.subr.mxu0 0.0
    %283 = vmatpush1.msra.mxu0 0.0
    %284 = vmatprep.subr.mxu0 0.0
    %285 = vmatpush1.msra.mxu0 0.0
    %286 = vmatprep.subr.mxu0 0.0
    %287 = vmatpush1.msra.mxu0 0.0
    %288 = vmatprep.subr.mxu0 0.0
    %289 = vmatpush1.msra.mxu0 0.0
    %290 = vmatprep.subr.mxu0 0.0
    %291 = vmatpush1.msra.mxu0 0.0
    %292 = vmatprep.subr.mxu0 0.0
    %293 = vmatpush1.msra.mxu0 0.0
    %294 = vmatprep.subr.mxu0 0.0
    %295 = vmatpush1.msra.mxu0 0.0
    %296 = vmatprep.mubr.f32.mxu0 0.0
    %297 = vmatmul.mubr.f32.gmra.mrb[0].mxu0 %v184
    %v298 = vpop.f32.mrb[0].mxu0
    %v299 = vadd.f32 %v225, %v298
    %v300 = vpop.f32.mrb[0].mxu0
    %v301 = vadd.f32 %v229, %v300
    %302 = vmatprep.mubr.f32.mxu0 0.0
    %303 = vmatmul.mubr.f32.gmra.mrb[0].mxu0 %v185
    %v304 = vpop.f32.mrb[0].mxu0
    %v305 = vadd.f32 %v225, %v304
    %v306 = vpop.f32.mrb[0].mxu0
    %v307 = vadd.f32 %v229, %v306
    %308 = vdwg.mxu0
    %v309 = vmax.f32 %v299, 0.0
    %v310 = vmax.f32 %v305, 0.0
    %v311 = vxor.u32 %v301, 2147483648
    %v312 = vxor.u32 %v307, 2147483648
    %v313 = vmul.f32 %v311, 1.442695
    %v314 = vpow.pop %v313
    %v315 = vmul.f32 %v312, 1.442695
    %v316 = vpow.pop %v315
    %v317 = vadd.f32 %v314, 1.0
    %v318 = vadd.f32 %v316, 1.0
    %v319 = vrcp.pop %v317
    %v320 = vmul.f32 1.0, %v319
    %v321 = vrcp.pop %v318
    %v322 = vmul.f32 1.0, %v321
    %v323 = vsub.f32 %v184, %v309
    %v324 = vsub.f32 %v185, %v310
    %v325 = vmul.f32 %v320, %v323
    %v326 = vmul.f32 %v322, %v324
    %v327 = vadd.f32 %v309, %v325
    %v328 = vadd.f32 %v310, %v326
    %329 = vst [vmem:[#allocation7] sm:$0xff] %v327
    %330 = vst [vmem:[#allocation7 + $0x8] sm:$0xff] %v328
    // Predicated region
    $region22: #{tpu_custom_call.1} parent=1 // pred_check
      _
    $region23: #{tpu_custom_call.1} parent=1 // pred_check_branch
      %332 = sbr.rel (0) target = $region25
    $region24: #{tpu_custom_call.1} parent=1 // pred_region
      %s334 = ssub.s32 256, 256
      %335 = vsyncadd [#allocation4], %s334
      %s336 = sshll.u32 [#allocation7], 4
      %s337 = int_to_ptr.vmem [resolvable:$true] %s336
      %342 = dma.vmem_to_hbm [thread:$0]  %s337, 256, %s3, [#allocation4], 128, 128, 8
    $region25: #{tpu_custom_call.1} parent=1 // pred_fallthru
      _
    // Predicated region
    $region26: #{tpu_custom_call.1} parent=1 // pred_check
      _
    $region27: #{tpu_custom_call.1} parent=1 // pred_check_branch
      %344 = sbr.rel (0) target = $region29
    $region28: #{tpu_custom_call.1} parent=1 // pred_region
      %345 = dma.done [#allocation4], 256
    $region29: #{tpu_custom_call.1} parent=1 // pred_fallthru
      _
    %346 = vsyncpa [#allocation3], 1
    %347 = vsyncpa [#allocation6], 1
    %348 = vsyncpa [#allocation4], 1

</llo_original>
